<compile_context>
chip_gen: v5e
topology: v5e:2x2
jax: 0.10.0
libtpu: 0.0.40
codegen_flags: <defaults>
</compile_context>

<pallas_src>
import jax
import jax.numpy as jnp
from jax.experimental import pallas as pl
from jax.experimental.pallas import tpu as pltpu


LANE = 128      # TPU lane width: feature dims padded to this for full MXU tiles
                # and lane-dense (unmasked) output stores.
SUBLANE = 8     # f32 sublane granularity for the batch (second-minor) axis.


def _round_up(n, m):
    return ((n + m - 1) // m) * m


def autoencoder_kernel(x_ref,
                       w1_ref, b1_ref,
                       w2_ref, b2_ref,
                       w3_ref, b3_ref,
                       w4_ref, b4_ref,
                       enc_ref, rec_ref):
    """Fused encoder + decoder: 4 Linears + 3 ReLUs in one VMEM-resident pass."""
    x = x_ref[...]

    # ---- encoder ----
    h1 = jnp.dot(x, w1_ref[...], preferred_element_type=jnp.float32) + b1_ref[...]
    h1 = jnp.maximum(h1, 0.0)                                   # ReLU

    enc = jnp.dot(h1.astype(w2_ref.dtype), w2_ref[...],
                  preferred_element_type=jnp.float32) + b2_ref[...]
    enc = jnp.maximum(enc, 0.0)                                 # ReLU

    # ---- decoder ----
    h3 = jnp.dot(enc.astype(w3_ref.dtype), w3_ref[...],
                 preferred_element_type=jnp.float32) + b3_ref[...]
    h3 = jnp.maximum(h3, 0.0)                                   # ReLU

    rec = jnp.dot(h3.astype(w4_ref.dtype), w4_ref[...],
                  preferred_element_type=jnp.float32) + b4_ref[...]

    enc_ref[...] = enc.astype(enc_ref.dtype)
    rec_ref[...] = rec.astype(rec_ref.dtype)


def _choose_batch_tile(b_pad):
    # One fat grid step for small batches (per-step overhead ~0.35us would
    # dominate otherwise); 256-row tiles for large batches so v7x's two
    # TensorCores and the software pipeline both get work while keeping MXU
    # row occupancy high.
    if b_pad <= 256:
        return b_pad
    tile = 256
    while b_pad % tile:
        tile //= 2              # b_pad is a multiple of 8 -> terminates at >= 8
    return tile


def autoencoder_forward(x, params, *, compute_dtype=jnp.float32):
    """x: [B, D]. params: dict of (w, b) with w stored as [in, out].

    Returns (encoded [B, H], reconstructed [B, D]).
    Set compute_dtype=jnp.bfloat16 on v6e/v7x to halve weight bytes and use the
    bf16-native MXU (accumulation stays f32); keep f32 on v5e.
    """
    B, D = x.shape
    H2 = params["w1"].shape[1]          # 2 * hidden_size
    H = params["w2"].shape[1]           # hidden_size

    # Zero-pad feature dims to 128 lanes and the batch to a multiple of 8
    # sublanes.  Padded weight rows/cols and bias entries are zero, so the
    # original output columns are numerically unchanged.
    Dp, H2p, Hp = (_round_up(d, LANE) for d in (D, H2, H))
    Bp = _round_up(B, SUBLANE)

    def pad2(a, rows, cols, dtype):
        return jnp.pad(a, ((0, rows - a.shape[0]), (0, cols - a.shape[1]))).astype(dtype)

    xp = pad2(x, Bp, Dp, compute_dtype)
    w1 = pad2(params["w1"], D, H2p, compute_dtype)[:Dp]
    w1 = jnp.pad(w1, ((0, Dp - D), (0, 0)))
    w2 = pad2(params["w2"], H2p, Hp, compute_dtype)
    w3 = pad2(params["w3"], Hp, H2p, compute_dtype)
    w4 = pad2(params["w4"], H2p, Dp, compute_dtype)
    b1 = pad2(params["b1"], 1, H2p, jnp.float32)
    b2 = pad2(params["b2"], 1, Hp, jnp.float32)
    b3 = pad2(params["b3"], 1, H2p, jnp.float32)
    b4 = pad2(params["b4"], 1, Dp, jnp.float32)

    batch_tile = _choose_batch_tile(Bp)
    grid = (Bp // batch_tile,)

    # Advisory cost for XLA's scheduler around the custom call.
    itemsize = jnp.dtype(compute_dtype).itemsize
    flops = 2 * Bp * (Dp * H2p + H2p * Hp + Hp * H2p + H2p * Dp)
    bytes_accessed = (
        Bp * Dp * itemsize                                        # x in
        + (Dp * H2p + H2p * Hp + Hp * H2p + H2p * Dp) * itemsize  # weights
        + (2 * H2p + Hp + Dp) * 4                                 # biases
        + Bp * (Hp + Dp) * 4)                                     # outputs
    cost = pl.CostEstimate(flops=flops, transcendentals=0,
                           bytes_accessed=bytes_accessed)

    # Weights/biases are tiny (<= 64 KiB each after padding) -> whole-block
    # resident with a constant index_map; double-buffer cost is negligible here.
    # TODO(synk): if D/H are scaled up so the four weights approach VMEM limits
    # (esp. v7x's 64 MiB), switch w1/w4 to K-tiled BlockSpecs + accumulator
    # scratch and raise vmem_limit_bytes.
    grid_spec = pltpu.PrefetchScalarGridSpec(
        num_scalar_prefetch=0,
        grid=grid,
        in_specs=[
            pl.BlockSpec((batch_tile, Dp), lambda i: (i, 0)),   # x tile
            pl.BlockSpec((Dp, H2p), lambda i: (0, 0)),          # Linear1 W
            pl.BlockSpec((1, H2p), lambda i: (0, 0)),           # Linear1 b
            pl.BlockSpec((H2p, Hp), lambda i: (0, 0)),          # Linear2 W
            pl.BlockSpec((1, Hp), lambda i: (0, 0)),            # Linear2 b
            pl.BlockSpec((Hp, H2p), lambda i: (0, 0)),          # Linear3 W
            pl.BlockSpec((1, H2p), lambda i: (0, 0)),           # Linear3 b
            pl.BlockSpec((H2p, Dp), lambda i: (0, 0)),          # Linear4 W
            pl.BlockSpec((1, Dp), lambda i: (0, 0)),            # Linear4 b
        ],
        out_specs=[
            pl.BlockSpec((batch_tile, Hp), lambda i: (i, 0)),   # encoded (lane-dense)
            pl.BlockSpec((batch_tile, Dp), lambda i: (i, 0)),   # reconstructed
        ],
    )

    enc_p, rec_p = pl.pallas_call(
        autoencoder_kernel,
        out_shape=(
            jax.ShapeDtypeStruct((Bp, Hp), jnp.float32),
            jax.ShapeDtypeStruct((Bp, Dp), jnp.float32),
        ),
        grid_spec=grid_spec,
        compiler_params=pltpu.CompilerParams(
            dimension_semantics=("parallel",)),
        cost_estimate=cost,
    )(xp, w1, b1, w2, b2, w3, b3, w4, b4)

    # Strip lane / batch padding back to the module's natural shapes.
    return enc_p[:B, :H], rec_p[:B, :D]


def init_params(key, input_shape, hidden_size):
    """Deterministic init mirroring the nn.Linear shapes (weights stored [in, out])."""
    H, H2 = hidden_size, 2 * hidden_size
    ks = jax.random.split(key, 8)

    def lin(kw, kb, fan_in, fan_out):
        bound = 1.0 / jnp.sqrt(fan_in)
        w = jax.random.uniform(kw, (fan_in, fan_out), jnp.float32, -bound, bound)
        b = jax.random.uniform(kb, (1, fan_out), jnp.float32, -bound, bound)
        return w, b

    w1, b1 = lin(ks[0], ks[1], input_shape, H2)   # Linear(input_shape, 2H)
    w2, b2 = lin(ks[2], ks[3], H2, H)             # Linear(2H, H)
    w3, b3 = lin(ks[4], ks[5], H, H2)             # Linear(H, 2H)
    w4, b4 = lin(ks[6], ks[7], H2, input_shape)   # Linear(2H, input_shape)
    return dict(w1=w1, b1=b1, w2=w2, b2=b2, w3=w3, b3=b3, w4=w4, b4=b4)


def reference_forward(x, p):
    relu = lambda v: jnp.maximum(v, 0.0)
    h1 = relu(x @ p["w1"] + p["b1"])
    enc = relu(h1 @ p["w2"] + p["b2"])
    h3 = relu(enc @ p["w3"] + p["b3"])
    rec = h3 @ p["w4"] + p["b4"]
    return enc, rec


if __name__ == "__main__":
    B, D, H = 16, 64, 32          # batch, input_shape, hidden_size
    key = jax.random.PRNGKey(0)
    kx, kp = jax.random.split(key)

    x = jax.random.normal(kx, (B, D), jnp.float32)
    params = init_params(kp, D, H)

    enc, rec = autoencoder_forward(x, params)          # f32: tight check
    enc, rec = jax.block_until_ready((enc, rec))

    enc_ref, rec_ref = reference_forward(x, params)
    assert enc.shape == (B, H) and rec.shape == (B, D)
    assert jnp.allclose(enc, enc_ref, atol=1e-5, rtol=1e-5)
    assert jnp.allclose(rec, rec_ref, atol=1e-5, rtol=1e-5)

    print("KERNEL_OK")
</pallas_src>

<mosaic_0001>
module attributes {stable_mosaic.version = 11 : i64} {
  func.func @autoencoder_kernel(%arg0: i32, %arg1: memref<16x128xf32, #tpu.memory_space<vmem>>, %arg2: memref<128x128xf32, #tpu.memory_space<vmem>>, %arg3: memref<1x128xf32, #tpu.memory_space<vmem>>, %arg4: memref<128x128xf32, #tpu.memory_space<vmem>>, %arg5: memref<1x128xf32, #tpu.memory_space<vmem>>, %arg6: memref<128x128xf32, #tpu.memory_space<vmem>>, %arg7: memref<1x128xf32, #tpu.memory_space<vmem>>, %arg8: memref<128x128xf32, #tpu.memory_space<vmem>>, %arg9: memref<1x128xf32, #tpu.memory_space<vmem>>, %arg10: memref<16x128xf32, #tpu.memory_space<vmem>>, %arg11: memref<16x128xf32, #tpu.memory_space<vmem>>) attributes {dimension_semantics = [#tpu.dimension_semantics<parallel>], iteration_bounds = array<i64: 1>, scalar_prefetch = 0 : i64, scratch_operands = 0 : i64, tpu.core_type = #tpu.core_type<tc>, window_params = [{transform_indices = @transform_0, window_bounds = array<i64: 16, 128>}, {pipeline_mode = #tpu.pipeline_mode<synchronous>, transform_indices = @transform_1, window_bounds = array<i64: 128, 128>}, {pipeline_mode = #tpu.pipeline_mode<synchronous>, transform_indices = @transform_2, window_bounds = array<i64: 1, 128>}, {pipeline_mode = #tpu.pipeline_mode<synchronous>, transform_indices = @transform_3, window_bounds = array<i64: 128, 128>}, {pipeline_mode = #tpu.pipeline_mode<synchronous>, transform_indices = @transform_4, window_bounds = array<i64: 1, 128>}, {pipeline_mode = #tpu.pipeline_mode<synchronous>, transform_indices = @transform_5, window_bounds = array<i64: 128, 128>}, {pipeline_mode = #tpu.pipeline_mode<synchronous>, transform_indices = @transform_6, window_bounds = array<i64: 1, 128>}, {pipeline_mode = #tpu.pipeline_mode<synchronous>, transform_indices = @transform_7, window_bounds = array<i64: 128, 128>}, {pipeline_mode = #tpu.pipeline_mode<synchronous>, transform_indices = @transform_8, window_bounds = array<i64: 1, 128>}, {transform_indices = @transform_9, window_bounds = array<i64: 16, 128>}, {transform_indices = @transform_10, window_bounds = array<i64: 16, 128>}]} {
    %c0 = arith.constant 0 : index
    %c0_0 = arith.constant 0 : index
    %0 = vector.load %arg1[%c0, %c0_0] : memref<16x128xf32, #tpu.memory_space<vmem>>, vector<16x128xf32>
    %c0_1 = arith.constant 0 : index
    %c0_2 = arith.constant 0 : index
    %1 = vector.load %arg2[%c0_1, %c0_2] : memref<128x128xf32, #tpu.memory_space<vmem>>, vector<128x128xf32>
    %cst = arith.constant dense<0.000000e+00> : vector<16x128xf32>
    %2 = tpu.matmul %0, %1, %cst {dimension_numbers = #tpu.dot_dimension_numbers<[1], [0], [0], [1], [0, 0, 1, 1], [], []>} : vector<16x128xf32>, vector<128x128xf32>, vector<16x128xf32> -> vector<16x128xf32>
    %c0_3 = arith.constant 0 : index
    %c0_4 = arith.constant 0 : index
    %3 = vector.load %arg3[%c0_3, %c0_4] : memref<1x128xf32, #tpu.memory_space<vmem>>, vector<1x128xf32>
    %4 = vector.broadcast %3 : vector<1x128xf32> to vector<16x128xf32>
    %5 = arith.addf %2, %4 : vector<16x128xf32>
    %cst_5 = arith.constant 0.000000e+00 : f32
    %6 = vector.broadcast %cst_5 : f32 to vector<16x128xf32>
    %7 = arith.maximumf %5, %6 : vector<16x128xf32>
    %c0_6 = arith.constant 0 : index
    %c0_7 = arith.constant 0 : index
    %8 = vector.load %arg4[%c0_6, %c0_7] : memref<128x128xf32, #tpu.memory_space<vmem>>, vector<128x128xf32>
    %cst_8 = arith.constant dense<0.000000e+00> : vector<16x128xf32>
    %9 = tpu.matmul %7, %8, %cst_8 {dimension_numbers = #tpu.dot_dimension_numbers<[1], [0], [0], [1], [0, 0, 1, 1], [], []>} : vector<16x128xf32>, vector<128x128xf32>, vector<16x128xf32> -> vector<16x128xf32>
    %c0_9 = arith.constant 0 : index
    %c0_10 = arith.constant 0 : index
    %10 = vector.load %arg5[%c0_9, %c0_10] : memref<1x128xf32, #tpu.memory_space<vmem>>, vector<1x128xf32>
    %11 = vector.broadcast %10 : vector<1x128xf32> to vector<16x128xf32>
    %12 = arith.addf %9, %11 : vector<16x128xf32>
    %cst_11 = arith.constant 0.000000e+00 : f32
    %13 = vector.broadcast %cst_11 : f32 to vector<16x128xf32>
    %14 = arith.maximumf %12, %13 : vector<16x128xf32>
    %c0_12 = arith.constant 0 : index
    %c0_13 = arith.constant 0 : index
    %15 = vector.load %arg6[%c0_12, %c0_13] : memref<128x128xf32, #tpu.memory_space<vmem>>, vector<128x128xf32>
    %cst_14 = arith.constant dense<0.000000e+00> : vector<16x128xf32>
    %16 = tpu.matmul %14, %15, %cst_14 {dimension_numbers = #tpu.dot_dimension_numbers<[1], [0], [0], [1], [0, 0, 1, 1], [], []>} : vector<16x128xf32>, vector<128x128xf32>, vector<16x128xf32> -> vector<16x128xf32>
    %c0_15 = arith.constant 0 : index
    %c0_16 = arith.constant 0 : index
    %17 = vector.load %arg7[%c0_15, %c0_16] : memref<1x128xf32, #tpu.memory_space<vmem>>, vector<1x128xf32>
    %18 = vector.broadcast %17 : vector<1x128xf32> to vector<16x128xf32>
    %19 = arith.addf %16, %18 : vector<16x128xf32>
    %cst_17 = arith.constant 0.000000e+00 : f32
    %20 = vector.broadcast %cst_17 : f32 to vector<16x128xf32>
    %21 = arith.maximumf %19, %20 : vector<16x128xf32>
    %c0_18 = arith.constant 0 : index
    %c0_19 = arith.constant 0 : index
    %22 = vector.load %arg8[%c0_18, %c0_19] : memref<128x128xf32, #tpu.memory_space<vmem>>, vector<128x128xf32>
    %cst_20 = arith.constant dense<0.000000e+00> : vector<16x128xf32>
    %23 = tpu.matmul %21, %22, %cst_20 {dimension_numbers = #tpu.dot_dimension_numbers<[1], [0], [0], [1], [0, 0, 1, 1], [], []>} : vector<16x128xf32>, vector<128x128xf32>, vector<16x128xf32> -> vector<16x128xf32>
    %c0_21 = arith.constant 0 : index
    %c0_22 = arith.constant 0 : index
    %24 = vector.load %arg9[%c0_21, %c0_22] : memref<1x128xf32, #tpu.memory_space<vmem>>, vector<1x128xf32>
    %25 = vector.broadcast %24 : vector<1x128xf32> to vector<16x128xf32>
    %26 = arith.addf %23, %25 : vector<16x128xf32>
    %c0_23 = arith.constant 0 : index
    %c0_24 = arith.constant 0 : index
    %27 = vector.load %arg10[%c0_23, %c0_24] : memref<16x128xf32, #tpu.memory_space<vmem>>, vector<16x128xf32>
    tpu.vector_store %arg10[%c0_23, %c0_24], %14 {strides = array<i32>} : memref<16x128xf32, #tpu.memory_space<vmem>>, vector<16x128xf32>,
    %c0_25 = arith.constant 0 : index
    %c0_26 = arith.constant 0 : index
    %28 = vector.load %arg11[%c0_25, %c0_26] : memref<16x128xf32, #tpu.memory_space<vmem>>, vector<16x128xf32>
    tpu.vector_store %arg11[%c0_25, %c0_26], %26 {strides = array<i32>} : memref<16x128xf32, #tpu.memory_space<vmem>>, vector<16x128xf32>,
    return
  }
  func.func @transform_0(%arg0: i32) -> (i32, i32) {
    %c0_i32 = arith.constant 0 : i32
    %c0_i32_0 = arith.constant 0 : i32
    return %arg0, %c0_i32 : i32, i32
  }
  func.func @transform_1(%arg0: i32) -> (i32, i32) {
    %c0_i32 = arith.constant 0 : i32
    %c0_i32_0 = arith.constant 0 : i32
    %c0_i32_1 = arith.constant 0 : i32
    return %c0_i32, %c0_i32_0 : i32, i32
  }
  func.func @transform_2(%arg0: i32) -> (i32, i32) {
    %c0_i32 = arith.constant 0 : i32
    %c0_i32_0 = arith.constant 0 : i32
    %c0_i32_1 = arith.constant 0 : i32
    return %c0_i32, %c0_i32_0 : i32, i32
  }
  func.func @transform_3(%arg0: i32) -> (i32, i32) {
    %c0_i32 = arith.constant 0 : i32
    %c0_i32_0 = arith.constant 0 : i32
    %c0_i32_1 = arith.constant 0 : i32
    return %c0_i32, %c0_i32_0 : i32, i32
  }
  func.func @transform_4(%arg0: i32) -> (i32, i32) {
    %c0_i32 = arith.constant 0 : i32
    %c0_i32_0 = arith.constant 0 : i32
    %c0_i32_1 = arith.constant 0 : i32
    return %c0_i32, %c0_i32_0 : i32, i32
  }
  func.func @transform_5(%arg0: i32) -> (i32, i32) {
    %c0_i32 = arith.constant 0 : i32
    %c0_i32_0 = arith.constant 0 : i32
    %c0_i32_1 = arith.constant 0 : i32
    return %c0_i32, %c0_i32_0 : i32, i32
  }
  func.func @transform_6(%arg0: i32) -> (i32, i32) {
    %c0_i32 = arith.constant 0 : i32
    %c0_i32_0 = arith.constant 0 : i32
    %c0_i32_1 = arith.constant 0 : i32
    return %c0_i32, %c0_i32_0 : i32, i32
  }
  func.func @transform_7(%arg0: i32) -> (i32, i32) {
    %c0_i32 = arith.constant 0 : i32
    %c0_i32_0 = arith.constant 0 : i32
    %c0_i32_1 = arith.constant 0 : i32
    return %c0_i32, %c0_i32_0 : i32, i32
  }
  func.func @transform_8(%arg0: i32) -> (i32, i32) {
    %c0_i32 = arith.constant 0 : i32
    %c0_i32_0 = arith.constant 0 : i32
    %c0_i32_1 = arith.constant 0 : i32
    return %c0_i32, %c0_i32_0 : i32, i32
  }
  func.func @transform_9(%arg0: i32) -> (i32, i32) {
    %c0_i32 = arith.constant 0 : i32
    %c0_i32_0 = arith.constant 0 : i32
    return %arg0, %c0_i32 : i32, i32
  }
  func.func @transform_10(%arg0: i32) -> (i32, i32) {
    %c0_i32 = arith.constant 0 : i32
    %c0_i32_0 = arith.constant 0 : i32
    return %arg0, %c0_i32 : i32, i32
  }
}

</mosaic_0001>

<llo_original>
// kernel: tpu_custom_call.1
$region0: #{tpu_custom_call.1}
  #allocation0 [shape = 'u32[]', space=smem, size = 0x4, offset = 0x4, fixed_abs, tag = 'smem constant byte address 0x4 - core index']
  #allocation1 [shape = 'u32[72,128]{1,0:T(1,128)}', space=vmem, size = 0x9000, scoped, tag = 'internal scratch']
  %s0 = inlined_call_operand.hbm [shape: f32[16,128], index: 0, kind: input, shape index: {}]
  %s1 = inlined_call_operand.hbm [shape: f32[128,128], index: 1, kind: input, shape index: {}]
  %s2 = inlined_call_operand.vmem [shape: f32[1,128], index: 2, kind: input, shape index: {}]
  %s3 = inlined_call_operand.hbm [shape: f32[128,128], index: 3, kind: input, shape index: {}]
  %s4 = inlined_call_operand.vmem [shape: f32[1,128], index: 4, kind: input, shape index: {}]
  %s5 = inlined_call_operand.hbm [shape: f32[128,128], index: 5, kind: input, shape index: {}]
  %s6 = inlined_call_operand.vmem [shape: f32[1,128], index: 6, kind: input, shape index: {}]
  %s7 = inlined_call_operand.hbm [shape: f32[128,128], index: 7, kind: input, shape index: {}]
  %s8 = inlined_call_operand.vmem [shape: f32[1,128], index: 8, kind: input, shape index: {}]
  %s9 = inlined_call_operand.hbm [shape: f32[16,128], index: 9, kind: output, shape index: {0}]
  %s10 = inlined_call_operand.hbm [shape: f32[16,128], index: 10, kind: output, shape index: {1}]
  %11 = xla_tuple %s9, %s10
  %s12 = sld [smem:[#allocation0]]
  $region74: #{tpu_custom_call.1} parent=0
    _
  %s14 = ssub.s32 1, %s12
  %s15 = scalar_select 0, %s14, %s12
  $region1: #{tpu_custom_call.1} parent=0
    #allocation2 [shape = 'u8[8192]{0}', space=vmem, size = 0x2000, scoped, tag = 'input window, operand 0, single buffered']
    #allocation3 [shape = 's32[1]{0}', space=sflag, size = 0x4, scoped, tag = 'scoped memory for tpu_custom_call.1']
    #allocation4 [shape = 's32[1]{0}', space=sflag, size = 0x4, scoped, tag = 'scoped memory for tpu_custom_call.1']
    #allocation5 [shape = 'u8[65536]{0}', space=vmem, size = 0x10000, scoped, tag = 'input window, operand 1, single buffered']
    #allocation6 [shape = 's32[1]{0}', space=sflag, size = 0x4, scoped, tag = 'scoped memory for tpu_custom_call.1']
    #allocation7 [shape = 'u8[65536]{0}', space=vmem, size = 0x10000, scoped, tag = 'input window, operand 3, single buffered']
    #allocation8 [shape = 'u8[65536]{0}', space=vmem, size = 0x10000, scoped, tag = 'input window, operand 5, single buffered']
    #allocation9 [shape = 's32[1]{0}', space=sflag, size = 0x4, scoped, tag = 'scoped memory for tpu_custom_call.1']
    #allocation10 [shape = 'u8[65536]{0}', space=vmem, size = 0x10000, scoped, tag = 'input window, operand 7, single buffered']
    #allocation11 [shape = 'u8[8192]{0}', space=vmem, size = 0x2000, scoped, tag = 'output window, operand 0, single buffered']
    #allocation12 [shape = 'u8[8192]{0}', space=vmem, size = 0x2000, scoped, tag = 'output window, operand 1, single buffered']
    #allocation13 [shape = 's32[1]{0}', space=sflag, size = 0x4, scoped, tag = 'scoped memory for tpu_custom_call.1']
    %16 = vsyncpa [#allocation3], 0
    %17 = vsyncpa [#allocation6], 0
    %18 = vsyncpa [#allocation9], 0
    %19 = vsyncpa [#allocation4], 0
    %20 = vsyncpa [#allocation13], 0
    // Predicated region
    $region2: #{tpu_custom_call.1} parent=1 // pred_check
      _
    $region3: #{tpu_custom_call.1} parent=1 // pred_check_branch
      %22 = sbr.rel (0) target = $region5
    $region4: #{tpu_custom_call.1} parent=1 // pred_region
      %24 = vsyncadd [#allocation3], 0
      %s25 = sshll.u32 %s0, 4
      %s26 = int_to_ptr.hbm [resolvable:$true] %s25
      %s27 = sshll.u32 [#allocation2], 4
      %s28 = int_to_ptr.vmem [resolvable:$true] %s27
      %33 = dma.hbm_to_vmem [thread:$0]  %s26, 256, %s28, [#allocation3], 128, 128, 8
    $region5: #{tpu_custom_call.1} parent=1 // pred_fallthru
      _
    // Predicated region
    $region6: #{tpu_custom_call.1} parent=1 // pred_check
      _
    $region7: #{tpu_custom_call.1} parent=1 // pred_check_branch
      %35 = sbr.rel (0) target = $region9
    $region8: #{tpu_custom_call.1} parent=1 // pred_region
      %37 = vsyncadd [#allocation6], 0
      %s38 = sshll.u32 %s1, 4
      %s39 = int_to_ptr.hbm [resolvable:$true] %s38
      %s40 = sshll.u32 [#allocation5], 4
      %s41 = int_to_ptr.vmem [resolvable:$true] %s40
      %46 = dma.hbm_to_vmem [thread:$0]  %s39, 2048, %s41, [#allocation6], 128, 128, 8
    $region9: #{tpu_custom_call.1} parent=1 // pred_fallthru
      _
    // Predicated region
    $region10: #{tpu_custom_call.1} parent=1 // pred_check
      _
    $region11: #{tpu_custom_call.1} parent=1 // pred_check_branch
      %48 = sbr.rel (0) target = $region13
    $region12: #{tpu_custom_call.1} parent=1 // pred_region
      _
    $region13: #{tpu_custom_call.1} parent=1 // pred_fallthru
      _
    // Predicated region
    $region14: #{tpu_custom_call.1} parent=1 // pred_check
      _
    $region15: #{tpu_custom_call.1} parent=1 // pred_check_branch
      %50 = sbr.rel (0) target = $region17
    $region16: #{tpu_custom_call.1} parent=1 // pred_region
      %52 = vsyncadd [#allocation6], 0
      %s53 = sshll.u32 %s3, 4
      %s54 = int_to_ptr.hbm [resolvable:$true] %s53
      %s55 = sshll.u32 [#allocation7], 4
      %s56 = int_to_ptr.vmem [resolvable:$true] %s55
      %61 = dma.hbm_to_vmem [thread:$0]  %s54, 2048, %s56, [#allocation6], 128, 128, 8
    $region17: #{tpu_custom_call.1} parent=1 // pred_fallthru
      _
    // Predicated region
    $region18: #{tpu_custom_call.1} parent=1 // pred_check
      _
    $region19: #{tpu_custom_call.1} parent=1 // pred_check_branch
      %63 = sbr.rel (0) target = $region21
    $region20: #{tpu_custom_call.1} parent=1 // pred_region
      _
    $region21: #{tpu_custom_call.1} parent=1 // pred_fallthru
      _
    // Predicated region
    $region22: #{tpu_custom_call.1} parent=1 // pred_check
      _
    $region23: #{tpu_custom_call.1} parent=1 // pred_check_branch
      %65 = sbr.rel (0) target = $region25
    $region24: #{tpu_custom_call.1} parent=1 // pred_region
      %67 = vsyncadd [#allocation9], 0
      %s68 = sshll.u32 %s5, 4
      %s69 = int_to_ptr.hbm [resolvable:$true] %s68
      %s70 = sshll.u32 [#allocation8], 4
      %s71 = int_to_ptr.vmem [resolvable:$true] %s70
      %76 = dma.hbm_to_vmem [thread:$0]  %s69, 2048, %s71, [#allocation9], 128, 128, 8
    $region25: #{tpu_custom_call.1} parent=1 // pred_fallthru
      _
    // Predicated region
    $region26: #{tpu_custom_call.1} parent=1 // pred_check
      _
    $region27: #{tpu_custom_call.1} parent=1 // pred_check_branch
      %78 = sbr.rel (0) target = $region29
    $region28: #{tpu_custom_call.1} parent=1 // pred_region
      _
    $region29: #{tpu_custom_call.1} parent=1 // pred_fallthru
      _
    // Predicated region
    $region30: #{tpu_custom_call.1} parent=1 // pred_check
      _
    $region31: #{tpu_custom_call.1} parent=1 // pred_check_branch
      %80 = sbr.rel (0) target = $region33
    $region32: #{tpu_custom_call.1} parent=1 // pred_region
      %82 = vsyncadd [#allocation9], 0
      %s83 = sshll.u32 %s7, 4
      %s84 = int_to_ptr.hbm [resolvable:$true] %s83
      %s85 = sshll.u32 [#allocation10], 4
      %s86 = int_to_ptr.vmem [resolvable:$true] %s85
      %91 = dma.hbm_to_vmem [thread:$0]  %s84, 2048, %s86, [#allocation9], 128, 128, 8
    $region33: #{tpu_custom_call.1} parent=1 // pred_fallthru
      _
    // Predicated region
    $region34: #{tpu_custom_call.1} parent=1 // pred_check
      _
    $region35: #{tpu_custom_call.1} parent=1 // pred_check_branch
      %93 = sbr.rel (0) target = $region37
    $region36: #{tpu_custom_call.1} parent=1 // pred_region
      _
    $region37: #{tpu_custom_call.1} parent=1 // pred_fallthru
      _
    // Predicated region
    $region38: #{tpu_custom_call.1} parent=1 // pred_check
      _
    $region39: #{tpu_custom_call.1} parent=1 // pred_check_branch
      %95 = sbr.rel (0) target = $region41
    $region40: #{tpu_custom_call.1} parent=1 // pred_region
      %97 = dma.done [#allocation3], 256
    $region41: #{tpu_custom_call.1} parent=1 // pred_fallthru
      _
    // Predicated region
    $region42: #{tpu_custom_call.1} parent=1 // pred_check
      _
    $region43: #{tpu_custom_call.1} parent=1 // pred_check_branch
      %99 = sbr.rel (0) target = $region45
    $region44: #{tpu_custom_call.1} parent=1 // pred_region
      %101 = dma.done [#allocation6], 2048
    $region45: #{tpu_custom_call.1} parent=1 // pred_fallthru
      _
    // Predicated region
    $region46: #{tpu_custom_call.1} parent=1 // pred_check
      _
    $region47: #{tpu_custom_call.1} parent=1 // pred_check_branch
      %103 = sbr.rel (0) target = $region49
    $region48: #{tpu_custom_call.1} parent=1 // pred_region
      %105 = dma.done [#allocation6], 2048
    $region49: #{tpu_custom_call.1} parent=1 // pred_fallthru
      _
    // Predicated region
    $region50: #{tpu_custom_call.1} parent=1 // pred_check
      _
    $region51: #{tpu_custom_call.1} parent=1 // pred_check_branch
      %107 = sbr.rel (0) target = $region53
    $region52: #{tpu_custom_call.1} parent=1 // pred_region
      %109 = dma.done [#allocation9], 2048
    $region53: #{tpu_custom_call.1} parent=1 // pred_fallthru
      _
    // Predicated region
    $region54: #{tpu_custom_call.1} parent=1 // pred_check
      _
    $region55: #{tpu_custom_call.1} parent=1 // pred_check_branch
      %111 = sbr.rel (0) target = $region57
    $region56: #{tpu_custom_call.1} parent=1 // pred_region
      %113 = dma.done [#allocation9], 2048
    $region57: #{tpu_custom_call.1} parent=1 // pred_fallthru
      _
    %v114 = vld [vmem:[#allocation2] sm:$0xff]
    %v115 = vld [vmem:[#allocation2 + $0x8] sm:$0xff]
    %v116 = vld [vmem:[#allocation5] sm:$0xff]
    %v117 = vld [vmem:[#allocation5 + $0x8] sm:$0xff]
    %v118 = vld [vmem:[#allocation5 + $0x10] sm:$0xff]
    %v119 = vld [vmem:[#allocation5 + $0x18] sm:$0xff]
    %v120 = vld [vmem:[#allocation5 + $0x20] sm:$0xff]
    %v121 = vld [vmem:[#allocation5 + $0x28] sm:$0xff]
    %v122 = vld [vmem:[#allocation5 + $0x30] sm:$0xff]
    %v123 = vld [vmem:[#allocation5 + $0x38] sm:$0xff]
    %v124 = vld [vmem:[#allocation5 + $0x40] sm:$0xff]
    %v125 = vld [vmem:[#allocation5 + $0x48] sm:$0xff]
    %v126 = vld [vmem:[#allocation5 + $0x50] sm:$0xff]
    %v127 = vld [vmem:[#allocation5 + $0x58] sm:$0xff]
    %v128 = vld [vmem:[#allocation5 + $0x60] sm:$0xff]
    %v129 = vld [vmem:[#allocation5 + $0x68] sm:$0xff]
    %v130 = vld [vmem:[#allocation5 + $0x70] sm:$0xff]
    %v131 = vld [vmem:[#allocation5 + $0x78] sm:$0xff]
    %v132 = vld [vmem:[%s2] sm:$0x1]
    %v134 = vperm.slane %v132, 0
    %136 = vmatpush.msra.mxu0 %v131
    %137 = vmatpush.msra.mxu0 %v130
    %138 = vmatpush.msra.mxu0 %v129
    %139 = vmatpush.msra.mxu0 %v128
    %140 = vmatpush.msra.mxu0 %v127
    %141 = vmatpush.msra.mxu0 %v126
    %142 = vmatpush.msra.mxu0 %v125
    %143 = vmatpush.msra.mxu0 %v124
    %144 = vmatpush.msra.mxu0 %v123
    %145 = vmatpush.msra.mxu0 %v122
    %146 = vmatpush.msra.mxu0 %v121
    %147 = vmatpush.msra.mxu0 %v120
    %148 = vmatpush.msra.mxu0 %v119
    %149 = vmatpush.msra.mxu0 %v118
    %150 = vmatpush.msra.mxu0 %v117
    %151 = vmatpush.msra.mxu0 %v116
    %152 = vmatmul.f32.gmra.mxu0 %v114
    %v153 = vpop.f32.mrf.mxu0
    %v154 = vadd.f32 %v134, %v153
    %155 = vmatmul.f32.gmra.mxu0 %v115
    %v156 = vpop.f32.mrf.mxu0
    %v157 = vadd.f32 %v134, %v156
    %158 = vdwg.mxu0
    %v159 = vmax.f32 %v154, 0.0
    %v160 = vmax.f32 %v157, 0.0
    %v161 = vld [vmem:[#allocation7] sm:$0xff]
    %v162 = vld [vmem:[#allocation7 + $0x8] sm:$0xff]
    %v163 = vld [vmem:[#allocation7 + $0x10] sm:$0xff]
    %v164 = vld [vmem:[#allocation7 + $0x18] sm:$0xff]
    %v165 = vld [vmem:[#allocation7 + $0x20] sm:$0xff]
    %v166 = vld [vmem:[#allocation7 + $0x28] sm:$0xff]
    %v167 = vld [vmem:[#allocation7 + $0x30] sm:$0xff]
    %v168 = vld [vmem:[#allocation7 + $0x38] sm:$0xff]
    %v169 = vld [vmem:[#allocation7 + $0x40] sm:$0xff]
    %v170 = vld [vmem:[#allocation7 + $0x48] sm:$0xff]
    %v171 = vld [vmem:[#allocation7 + $0x50] sm:$0xff]
    %v172 = vld [vmem:[#allocation7 + $0x58] sm:$0xff]
    %v173 = vld [vmem:[#allocation7 + $0x60] sm:$0xff]
    %v174 = vld [vmem:[#allocation7 + $0x68] sm:$0xff]
    %v175 = vld [vmem:[#allocation7 + $0x70] sm:$0xff]
    %v176 = vld [vmem:[#allocation7 + $0x78] sm:$0xff]
    %v177 = vld [vmem:[%s4] sm:$0x1]
    %v179 = vperm.slane %v177, 0
    %181 = vmatpush.msra.mxu0 %v176
    %182 = vmatpush.msra.mxu0 %v175
    %183 = vmatpush.msra.mxu0 %v174
    %184 = vmatpush.msra.mxu0 %v173
    %185 = vmatpush.msra.mxu0 %v172
    %186 = vmatpush.msra.mxu0 %v171
    %187 = vmatpush.msra.mxu0 %v170
    %188 = vmatpush.msra.mxu0 %v169
    %189 = vmatpush.msra.mxu0 %v168
    %190 = vmatpush.msra.mxu0 %v167
    %191 = vmatpush.msra.mxu0 %v166
    %192 = vmatpush.msra.mxu0 %v165
    %193 = vmatpush.msra.mxu0 %v164
    %194 = vmatpush.msra.mxu0 %v163
    %195 = vmatpush.msra.mxu0 %v162
    %196 = vmatpush.msra.mxu0 %v161
    %197 = vmatmul.f32.gmra.mxu0 %v159
    %v198 = vpop.f32.mrf.mxu0
    %v199 = vadd.f32 %v179, %v198
    %200 = vmatmul.f32.gmra.mxu0 %v160
    %v201 = vpop.f32.mrf.mxu0
    %v202 = vadd.f32 %v179, %v201
    %203 = vdwg.mxu0
    %v204 = vmax.f32 %v199, 0.0
    %v205 = vmax.f32 %v202, 0.0
    %v206 = vld [vmem:[#allocation8] sm:$0xff]
    %v207 = vld [vmem:[#allocation8 + $0x8] sm:$0xff]
    %v208 = vld [vmem:[#allocation8 + $0x10] sm:$0xff]
    %v209 = vld [vmem:[#allocation8 + $0x18] sm:$0xff]
    %v210 = vld [vmem:[#allocation8 + $0x20] sm:$0xff]
    %v211 = vld [vmem:[#allocation8 + $0x28] sm:$0xff]
    %v212 = vld [vmem:[#allocation8 + $0x30] sm:$0xff]
    %v213 = vld [vmem:[#allocation8 + $0x38] sm:$0xff]
    %v214 = vld [vmem:[#allocation8 + $0x40] sm:$0xff]
    %v215 = vld [vmem:[#allocation8 + $0x48] sm:$0xff]
    %v216 = vld [vmem:[#allocation8 + $0x50] sm:$0xff]
    %v217 = vld [vmem:[#allocation8 + $0x58] sm:$0xff]
    %v218 = vld [vmem:[#allocation8 + $0x60] sm:$0xff]
    %v219 = vld [vmem:[#allocation8 + $0x68] sm:$0xff]
    %v220 = vld [vmem:[#allocation8 + $0x70] sm:$0xff]
    %v221 = vld [vmem:[#allocation8 + $0x78] sm:$0xff]
    %v222 = vld [vmem:[%s6] sm:$0x1]
    %v224 = vperm.slane %v222, 0
    %226 = vmatpush.msra.mxu0 %v221
    %227 = vmatpush.msra.mxu0 %v220
    %228 = vmatpush.msra.mxu0 %v219
    %229 = vmatpush.msra.mxu0 %v218
    %230 = vmatpush.msra.mxu0 %v217
    %231 = vmatpush.msra.mxu0 %v216
    %232 = vmatpush.msra.mxu0 %v215
    %233 = vmatpush.msra.mxu0 %v214
    %234 = vmatpush.msra.mxu0 %v213
    %235 = vmatpush.msra.mxu0 %v212
    %236 = vmatpush.msra.mxu0 %v211
    %237 = vmatpush.msra.mxu0 %v210
    %238 = vmatpush.msra.mxu0 %v209
    %239 = vmatpush.msra.mxu0 %v208
    %240 = vmatpush.msra.mxu0 %v207
    %241 = vmatpush.msra.mxu0 %v206
    %242 = vmatmul.f32.gmra.mxu0 %v204
    %v243 = vpop.f32.mrf.mxu0
    %v244 = vadd.f32 %v224, %v243
    %245 = vmatmul.f32.gmra.mxu0 %v205
    %v246 = vpop.f32.mrf.mxu0
    %v247 = vadd.f32 %v224, %v246
    %248 = vdwg.mxu0
    %v249 = vmax.f32 %v244, 0.0
    %v250 = vmax.f32 %v247, 0.0
    %v251 = vld [vmem:[#allocation10] sm:$0xff]
    %v252 = vld [vmem:[#allocation10 + $0x8] sm:$0xff]
    %v253 = vld [vmem:[#allocation10 + $0x10] sm:$0xff]
    %v254 = vld [vmem:[#allocation10 + $0x18] sm:$0xff]
    %v255 = vld [vmem:[#allocation10 + $0x20] sm:$0xff]
    %v256 = vld [vmem:[#allocation10 + $0x28] sm:$0xff]
    %v257 = vld [vmem:[#allocation10 + $0x30] sm:$0xff]
    %v258 = vld [vmem:[#allocation10 + $0x38] sm:$0xff]
    %v259 = vld [vmem:[#allocation10 + $0x40] sm:$0xff]
    %v260 = vld [vmem:[#allocation10 + $0x48] sm:$0xff]
    %v261 = vld [vmem:[#allocation10 + $0x50] sm:$0xff]
    %v262 = vld [vmem:[#allocation10 + $0x58] sm:$0xff]
    %v263 = vld [vmem:[#allocation10 + $0x60] sm:$0xff]
    %v264 = vld [vmem:[#allocation10 + $0x68] sm:$0xff]
    %v265 = vld [vmem:[#allocation10 + $0x70] sm:$0xff]
    %v266 = vld [vmem:[#allocation10 + $0x78] sm:$0xff]
    %v267 = vld [vmem:[%s8] sm:$0x1]
    %v269 = vperm.slane %v267, 0
    %271 = vmatpush.msra.mxu0 %v266
    %272 = vmatpush.msra.mxu0 %v265
    %273 = vmatpush.msra.mxu0 %v264
    %274 = vmatpush.msra.mxu0 %v263
    %275 = vmatpush.msra.mxu0 %v262
    %276 = vmatpush.msra.mxu0 %v261
    %277 = vmatpush.msra.mxu0 %v260
    %278 = vmatpush.msra.mxu0 %v259
    %279 = vmatpush.msra.mxu0 %v258
    %280 = vmatpush.msra.mxu0 %v257
    %281 = vmatpush.msra.mxu0 %v256
    %282 = vmatpush.msra.mxu0 %v255
    %283 = vmatpush.msra.mxu0 %v254
    %284 = vmatpush.msra.mxu0 %v253
    %285 = vmatpush.msra.mxu0 %v252
    %286 = vmatpush.msra.mxu0 %v251
    %287 = vmatmul.f32.gmra.mxu0 %v249
    %v288 = vpop.f32.mrf.mxu0
    %v289 = vadd.f32 %v269, %v288
    %290 = vmatmul.f32.gmra.mxu0 %v250
    %v291 = vpop.f32.mrf.mxu0
    %v292 = vadd.f32 %v269, %v291
    %293 = vdwg.mxu0
    %294 = vst [vmem:[#allocation11] sm:$0xff] %v204
    %295 = vst [vmem:[#allocation11 + $0x8] sm:$0xff] %v205
    %296 = vst [vmem:[#allocation12] sm:$0xff] %v289
    %297 = vst [vmem:[#allocation12 + $0x8] sm:$0xff] %v292
    // Predicated region
    $region58: #{tpu_custom_call.1} parent=1 // pred_check
      _
    $region59: #{tpu_custom_call.1} parent=1 // pred_check_branch
      %299 = sbr.rel (0) target = $region61
    $region60: #{tpu_custom_call.1} parent=1 // pred_region
      %301 = vsyncadd [#allocation4], 0
      %s302 = sshll.u32 [#allocation11], 4
      %s303 = int_to_ptr.vmem [resolvable:$true] %s302
      %s304 = sshll.u32 %s9, 4
      %s305 = int_to_ptr.hbm [resolvable:$true] %s304
      %310 = dma.vmem_to_hbm [thread:$0]  %s303, 256, %s305, [#allocation4], 128, 128, 8
    $region61: #{tpu_custom_call.1} parent=1 // pred_fallthru
      _
    // Predicated region
    $region62: #{tpu_custom_call.1} parent=1 // pred_check
      _
    $region63: #{tpu_custom_call.1} parent=1 // pred_check_branch
      %312 = sbr.rel (0) target = $region65
    $region64: #{tpu_custom_call.1} parent=1 // pred_region
      %314 = vsyncadd [#allocation13], 0
      %s315 = sshll.u32 [#allocation12], 4
      %s316 = int_to_ptr.vmem [resolvable:$true] %s315
      %s317 = sshll.u32 %s10, 4
      %s318 = int_to_ptr.hbm [resolvable:$true] %s317
      %323 = dma.vmem_to_hbm [thread:$0]  %s316, 256, %s318, [#allocation13], 128, 128, 8
    $region65: #{tpu_custom_call.1} parent=1 // pred_fallthru
      _
    // Predicated region
    $region66: #{tpu_custom_call.1} parent=1 // pred_check
      _
    $region67: #{tpu_custom_call.1} parent=1 // pred_check_branch
      %325 = sbr.rel (0) target = $region69
    $region68: #{tpu_custom_call.1} parent=1 // pred_region
      %327 = dma.done [#allocation4], 256
    $region69: #{tpu_custom_call.1} parent=1 // pred_fallthru
      _
    // Predicated region
    $region70: #{tpu_custom_call.1} parent=1 // pred_check
      _
    $region71: #{tpu_custom_call.1} parent=1 // pred_check_branch
      %329 = sbr.rel (0) target = $region73
    $region72: #{tpu_custom_call.1} parent=1 // pred_region
      %331 = dma.done [#allocation13], 256
    $region73: #{tpu_custom_call.1} parent=1 // pred_fallthru
      _
    %332 = vsyncpa [#allocation3], 1
    %333 = vsyncpa [#allocation6], 1
    %334 = vsyncpa [#allocation9], 1
    %335 = vsyncpa [#allocation4], 1
    %336 = vsyncpa [#allocation13], 1

</llo_original>
